<compile_context>
chip_gen: v7x
topology: tpu7x:2x2x1
jax: 0.10.0
libtpu: 0.0.40
codegen_flags: <defaults>
</compile_context>

<pallas_src>
import jax
import jax.numpy as jnp
from jax.experimental import pallas as pl
from jax.experimental.pallas import tpu as pltpu


def _make_vae_loss_kernel(lam, M, total_elems):
    inv_total = 1.0 / float(total_elems)
    inv_m = 1.0 / float(M)
    lam_f = float(lam)

    def kernel(dist_ref, out_ref, tgt_ref, loss_ref, recon_ref, entr_ref, acc_ref):
        pid = pl.program_id(0)

        # ---- init running sum-of-squares accumulator ----
        @pl.when(pid == 0)
        def _():
            acc_ref[...] = jnp.zeros_like(acc_ref)

        # ---- streamed partial MSE: one (TR, 128) tile per grid step ----
        diff = out_ref[...].astype(jnp.float32) - tgt_ref[...].astype(jnp.float32)
        acc_ref[...] += jnp.sum(diff * diff, keepdims=True)  # (1, 1)

        # ---- finalize: mse, lane-dense entropy over the whole batch, loss ----
        @pl.when(pid == pl.num_programs(0) - 1)
        def _():
            mse = acc_ref[...] * inv_total                       # (1, 1)
            recon_ref[...] = mse

            d = dist_ref[...].astype(jnp.float32) + 1e-7         # (B, M*N)
            en = -d * jnp.log(d)
            e = jnp.sum(en, axis=-1, keepdims=True) * inv_m      # (B, 1)
            entr_ref[...] = e
            loss_ref[...] = mse - lam_f * e                      # broadcast (1,1)->(B,1)

    return kernel


def vae_loss_pallas(dist, outputs, targets, lam):
    """Returns (loss[B], loss_recon[], loss_entr[B]) matching the PyTorch module."""
    B, M, N = dist.shape
    total = outputs.size
    assert targets.size == total

    # Flatten MSE operands row-major into a lane-dense (rows, 128) slab.
    # Zero-pad BOTH identically so padded diffs contribute exactly 0.
    flat_out = outputs.reshape(-1)
    flat_tgt = targets.reshape(-1)
    rows = pl.cdiv(total, 128)

    TR = 1024                                   # ~512 KiB/tile/input at f32
    if rows <= TR:
        TR = max(8, pl.cdiv(rows, 8) * 8)       # small case: single well-shaped tile
    padded_rows = pl.cdiv(rows, TR) * TR
    num_tiles = padded_rows // TR

    pad_elems = padded_rows * 128 - total
    if pad_elems:
        flat_out = jnp.pad(flat_out, (0, pad_elems))
        flat_tgt = jnp.pad(flat_tgt, (0, pad_elems))
    out2d = flat_out.reshape(padded_rows, 128)
    tgt2d = flat_tgt.reshape(padded_rows, 128)

    # Entropy input: one lane-dense pass over the whole batch.
    # TODO(synk): if dist ever gets large, give it its own tiled BlockSpec over B.
    dist2d = dist.reshape(B, M * N)

    kernel = _make_vae_loss_kernel(lam, M, total)

    # VMEM budget: 2 streamed inputs x 2 pipeline buffers x tile + dist + headroom.
    itemsize = jnp.dtype(outputs.dtype).itemsize
    vmem_need = (2 * 2 * TR * 128 * itemsize
                 + 2 * dist2d.size * jnp.dtype(dist.dtype).itemsize
                 + (4 << 20))
    vmem_limit = int(min(max(vmem_need, 8 << 20), 32 << 20))

    loss, recon, entr = pl.pallas_call(
        kernel,
        out_shape=(
            jax.ShapeDtypeStruct((B, 1), jnp.float32),   # loss
            jax.ShapeDtypeStruct((1, 1), jnp.float32),   # loss_recon
            jax.ShapeDtypeStruct((B, 1), jnp.float32),   # loss_entr
        ),
        grid=(num_tiles,),
        in_specs=[
            pl.BlockSpec((B, M * N), lambda i: (0, 0)),   # dist (resident, tiny)
            pl.BlockSpec((TR, 128), lambda i: (i, 0)),    # outputs tile (streamed)
            pl.BlockSpec((TR, 128), lambda i: (i, 0)),    # targets tile (streamed)
        ],
        out_specs=(
            pl.BlockSpec((B, 1), lambda i: (0, 0)),
            pl.BlockSpec((1, 1), lambda i: (0, 0)),
            pl.BlockSpec((B, 1), lambda i: (0, 0)),
        ),
        scratch_shapes=[pltpu.VMEM((1, 1), jnp.float32)],  # running sum of squares
        compiler_params=pltpu.CompilerParams(
            dimension_semantics=("arbitrary",),            # reduction axis
            vmem_limit_bytes=vmem_limit,
        ),
    )(dist2d, out2d, tgt2d)

    return loss.reshape(B), recon.reshape(()), entr.reshape(B)


def _vae_loss_ref(dist, outputs, targets, lam):
    """Pure-JAX reference mirroring the PyTorch forward."""
    loss_recon = jnp.mean((outputs.astype(jnp.float32) - targets.astype(jnp.float32)) ** 2)
    d = dist.astype(jnp.float32) + 1e-7
    en = -d * jnp.log(d)
    loss_entr = jnp.sum(jnp.sum(en, axis=-1), axis=-1) / en.shape[-2]
    loss = loss_recon - lam * loss_entr
    return loss, loss_recon, loss_entr


if __name__ == "__main__":
    lam = 0.5  # deterministic "parameter" of the module

    key = jax.random.PRNGKey(0)
    k1, k2, k3 = jax.random.split(key, 3)

    B, M, N = 2, 8, 16          # dist: (batch, seq, vocab)-like distribution
    C, H, W = 4, 16, 16         # outputs/targets: NCHW images

    dist = jax.nn.softmax(jax.random.normal(k1, (B, M, N), dtype=jnp.float32), axis=-1)
    outputs = jax.random.normal(k2, (B, C, H, W), dtype=jnp.float32)
    targets = jax.random.normal(k3, (B, C, H, W), dtype=jnp.float32)

    loss, recon, entr = vae_loss_pallas(dist, outputs, targets, lam)
    jax.block_until_ready((loss, recon, entr))

    # sanity check against the pure-JAX reference
    loss_r, recon_r, entr_r = _vae_loss_ref(dist, outputs, targets, lam)
    assert jnp.allclose(loss, loss_r, atol=1e-5, rtol=1e-5)
    assert jnp.allclose(recon, recon_r, atol=1e-5, rtol=1e-5)
    assert jnp.allclose(entr, entr_r, atol=1e-5, rtol=1e-5)

    print("KERNEL_OK")
</pallas_src>

<mosaic_0001>
module attributes {stable_mosaic.version = 11 : i64} {
  func.func @kernel(%arg0: i32, %arg1: memref<2x128xf32, #tpu.memory_space<vmem>>, %arg2: memref<16x128xf32, #tpu.memory_space<vmem>>, %arg3: memref<16x128xf32, #tpu.memory_space<vmem>>, %arg4: memref<2x1xf32, #tpu.memory_space<vmem>>, %arg5: memref<1x1xf32, #tpu.memory_space<vmem>>, %arg6: memref<2x1xf32, #tpu.memory_space<vmem>>, %arg7: memref<1x1xf32, #tpu.memory_space<vmem>>) attributes {dimension_semantics = [#tpu.dimension_semantics<arbitrary>], iteration_bounds = array<i64: 1>, scalar_prefetch = 0 : i64, scratch_operands = 1 : i64, tpu.core_type = #tpu.core_type<tc>, window_params = [{pipeline_mode = #tpu.pipeline_mode<synchronous>, transform_indices = @transform_0, window_bounds = array<i64: 2, 128>}, {transform_indices = @transform_1, window_bounds = array<i64: 16, 128>}, {transform_indices = @transform_2, window_bounds = array<i64: 16, 128>}, {pipeline_mode = #tpu.pipeline_mode<synchronous>, transform_indices = @transform_3, window_bounds = array<i64: 2, 1>}, {pipeline_mode = #tpu.pipeline_mode<synchronous>, transform_indices = @transform_4, window_bounds = array<i64: 1, 1>}, {pipeline_mode = #tpu.pipeline_mode<synchronous>, transform_indices = @transform_5, window_bounds = array<i64: 2, 1>}]} {
    %c0_i32 = arith.constant 0 : i32
    %0 = arith.cmpi eq, %arg0, %c0_i32 : i32
    %1 = arith.extui %0 : i1 to i32
    %c0_i32_0 = arith.constant 0 : i32
    %2 = arith.cmpi ne, %1, %c0_i32_0 : i32
    scf.if %2 {
      %cst_10 = arith.constant 0.000000e+00 : f32
      %18 = vector.broadcast %cst_10 : f32 to vector<1x1xf32>
      %c0_11 = arith.constant 0 : index
      %c0_12 = arith.constant 0 : index
      %19 = vector.load %arg7[%c0_11, %c0_12] : memref<1x1xf32, #tpu.memory_space<vmem>>, vector<1x1xf32>
      tpu.vector_store %arg7[%c0_11, %c0_12], %18 {strides = array<i32>} : memref<1x1xf32, #tpu.memory_space<vmem>>, vector<1x1xf32>,
    } else {
    }
    %c0 = arith.constant 0 : index
    %c0_1 = arith.constant 0 : index
    %3 = vector.load %arg2[%c0, %c0_1] : memref<16x128xf32, #tpu.memory_space<vmem>>, vector<16x128xf32>
    %c0_2 = arith.constant 0 : index
    %c0_3 = arith.constant 0 : index
    %4 = vector.load %arg3[%c0_2, %c0_3] : memref<16x128xf32, #tpu.memory_space<vmem>>, vector<16x128xf32>
    %5 = arith.subf %3, %4 : vector<16x128xf32>
    %c0_4 = arith.constant 0 : index
    %c0_5 = arith.constant 0 : index
    %6 = vector.load %arg7[%c0_4, %c0_5] : memref<1x1xf32, #tpu.memory_space<vmem>>, vector<1x1xf32>
    %7 = arith.mulf %5, %5 : vector<16x128xf32>
    %8 = vector.shape_cast %7 : vector<16x128xf32> to vector<1x16x128xf32>
    %cst = arith.constant dense<0.000000e+00> : vector<1xf32>
    %9 = vector.multi_reduction <add>, %8, %cst [1, 2] : vector<1x16x128xf32> to vector<1xf32>
    %10 = vector.shape_cast %9 : vector<1xf32> to vector<1x1x1xf32>
    %11 = vector.extract %10[0, 0, 0] : f32 from vector<1x1x1xf32>
    %12 = vector.broadcast %11 : f32 to vector<1x1xf32>
    %13 = arith.addf %6, %12 : vector<1x1xf32>
    %c0_6 = arith.constant 0 : index
    %c0_7 = arith.constant 0 : index
    %14 = vector.load %arg7[%c0_6, %c0_7] : memref<1x1xf32, #tpu.memory_space<vmem>>, vector<1x1xf32>
    tpu.vector_store %arg7[%c0_6, %c0_7], %13 {strides = array<i32>} : memref<1x1xf32, #tpu.memory_space<vmem>>, vector<1x1xf32>,
    %c0_i32_8 = arith.constant 0 : i32
    %15 = arith.cmpi eq, %arg0, %c0_i32_8 : i32
    %16 = arith.extui %15 : i1 to i32
    %c0_i32_9 = arith.constant 0 : i32
    %17 = arith.cmpi ne, %16, %c0_i32_9 : i32
    scf.if %17 {
      %c0_10 = arith.constant 0 : index
      %c0_11 = arith.constant 0 : index
      %18 = vector.load %arg7[%c0_10, %c0_11] : memref<1x1xf32, #tpu.memory_space<vmem>>, vector<1x1xf32>
      %cst_12 = arith.constant 4.8828125E-4 : f32
      %19 = vector.broadcast %cst_12 : f32 to vector<1x1xf32>
      %20 = arith.mulf %18, %19 : vector<1x1xf32>
      %c0_13 = arith.constant 0 : index
      %c0_14 = arith.constant 0 : index
      %21 = vector.load %arg5[%c0_13, %c0_14] : memref<1x1xf32, #tpu.memory_space<vmem>>, vector<1x1xf32>
      tpu.vector_store %arg5[%c0_13, %c0_14], %20 {strides = array<i32>} : memref<1x1xf32, #tpu.memory_space<vmem>>, vector<1x1xf32>,
      %c0_15 = arith.constant 0 : index
      %c0_16 = arith.constant 0 : index
      %22 = vector.load %arg1[%c0_15, %c0_16] : memref<2x128xf32, #tpu.memory_space<vmem>>, vector<2x128xf32>
      %cst_17 = arith.constant 1.000000e-07 : f32
      %23 = vector.broadcast %cst_17 : f32 to vector<2x128xf32>
      %24 = arith.addf %22, %23 : vector<2x128xf32>
      %cst_18 = arith.constant 0.000000e+00 : f32
      %25 = vector.broadcast %cst_18 : f32 to vector<2x128xf32>
      %26 = arith.subf %25, %24 : vector<2x128xf32>
      %27 = math.log %24 : vector<2x128xf32>
      %28 = arith.mulf %26, %27 : vector<2x128xf32>
      %cst_19 = arith.constant dense<0.000000e+00> : vector<2xf32>
      %29 = vector.multi_reduction <add>, %28, %cst_19 [1] : vector<2x128xf32> to vector<2xf32>
      %30 = vector.shape_cast %29 : vector<2xf32> to vector<2x1xf32>
      %cst_20 = arith.constant 1.250000e-01 : f32
      %31 = vector.broadcast %cst_20 : f32 to vector<2x1xf32>
      %32 = arith.mulf %30, %31 : vector<2x1xf32>
      %c0_21 = arith.constant 0 : index
      %c0_22 = arith.constant 0 : index
      %33 = vector.load %arg6[%c0_21, %c0_22] : memref<2x1xf32, #tpu.memory_space<vmem>>, vector<2x1xf32>
      tpu.vector_store %arg6[%c0_21, %c0_22], %32 {strides = array<i32>} : memref<2x1xf32, #tpu.memory_space<vmem>>, vector<2x1xf32>,
      %cst_23 = arith.constant 5.000000e-01 : f32
      %34 = vector.broadcast %cst_23 : f32 to vector<2x1xf32>
      %35 = arith.mulf %34, %32 : vector<2x1xf32>
      %36 = vector.broadcast %20 : vector<1x1xf32> to vector<2x1xf32>
      %37 = arith.subf %36, %35 : vector<2x1xf32>
      %c0_24 = arith.constant 0 : index
      %c0_25 = arith.constant 0 : index
      %38 = vector.load %arg4[%c0_24, %c0_25] : memref<2x1xf32, #tpu.memory_space<vmem>>, vector<2x1xf32>
      tpu.vector_store %arg4[%c0_24, %c0_25], %37 {strides = array<i32>} : memref<2x1xf32, #tpu.memory_space<vmem>>, vector<2x1xf32>,
    } else {
    }
    return
  }
  func.func @transform_0(%arg0: i32) -> (i32, i32) {
    %c0_i32 = arith.constant 0 : i32
    %c0_i32_0 = arith.constant 0 : i32
    %c0_i32_1 = arith.constant 0 : i32
    return %c0_i32, %c0_i32_0 : i32, i32
  }
  func.func @transform_1(%arg0: i32) -> (i32, i32) {
    %c0_i32 = arith.constant 0 : i32
    %c0_i32_0 = arith.constant 0 : i32
    return %arg0, %c0_i32 : i32, i32
  }
  func.func @transform_2(%arg0: i32) -> (i32, i32) {
    %c0_i32 = arith.constant 0 : i32
    %c0_i32_0 = arith.constant 0 : i32
    return %arg0, %c0_i32 : i32, i32
  }
  func.func @transform_3(%arg0: i32) -> (i32, i32) {
    %c0_i32 = arith.constant 0 : i32
    %c0_i32_0 = arith.constant 0 : i32
    %c0_i32_1 = arith.constant 0 : i32
    return %c0_i32, %c0_i32_0 : i32, i32
  }
  func.func @transform_4(%arg0: i32) -> (i32, i32) {
    %c0_i32 = arith.constant 0 : i32
    %c0_i32_0 = arith.constant 0 : i32
    %c0_i32_1 = arith.constant 0 : i32
    return %c0_i32, %c0_i32_0 : i32, i32
  }
  func.func @transform_5(%arg0: i32) -> (i32, i32) {
    %c0_i32 = arith.constant 0 : i32
    %c0_i32_0 = arith.constant 0 : i32
    %c0_i32_1 = arith.constant 0 : i32
    return %c0_i32, %c0_i32_0 : i32, i32
  }
}

</mosaic_0001>

<llo_original>
// kernel: tpu_custom_call.1
$region0: #{tpu_custom_call.1}
  #allocation0 [shape = 'u32[]', space=smem, size = 0x4, offset = 0x4, fixed_abs, tag = 'smem constant byte address 0x4 - core index']
  #allocation1 [shape = 'u32[144,128]{1,0:T(1,128)}', space=vmem, size = 0x12000, scoped, tag = 'internal scratch']
  #allocation2 [shape = 'f32[1,1]{1,0:T(1,128)}', space=vmem, size = 0x200, scoped, tag = 'scratch operand']
  %s0 = inlined_call_operand.hbm [shape: f32[2,128], index: 0, kind: input, shape index: {}]
  %s1 = inlined_call_operand.hbm [shape: f32[16,128], index: 1, kind: input, shape index: {}]
  %s2 = inlined_call_operand.hbm [shape: f32[16,128], index: 2, kind: input, shape index: {}]
  %s3 = inlined_call_operand.vmem [shape: f32[2,1], index: 3, kind: output, shape index: {0}]
  %s4 = inlined_call_operand.hbm [shape: f32[1,1], index: 4, kind: output, shape index: {1}]
  %s5 = inlined_call_operand.vmem [shape: f32[2,1], index: 5, kind: output, shape index: {2}]
  %6 = xla_tuple %s3, %s4, %s5
  %s7 = sld [smem:[#allocation0]]
  $region58: #{tpu_custom_call.1} parent=0
    _
  %s9 = ssub.s32 1, %s7
  %s10 = scalar_select 0, %s9, %s7
  $region1: #{tpu_custom_call.1} parent=0
    #allocation3 [shape = 'u8[1024]{0}', space=vmem, size = 0x400, scoped, tag = 'input window, operand 0, single buffered']
    #allocation4 [shape = 's32[1]{0}', space=sflag, size = 0x4, scoped, tag = 'scoped memory for tpu_custom_call.1']
    #allocation5 [shape = 's32[1]{0}', space=sflag, size = 0x4, scoped, tag = 'scoped memory for tpu_custom_call.1']
    #allocation6 [shape = 'u8[8192]{0}', space=vmem, size = 0x2000, scoped, tag = 'input window, operand 1, single buffered']
    #allocation7 [shape = 's32[1]{0}', space=sflag, size = 0x4, scoped, tag = 'scoped memory for tpu_custom_call.1']
    #allocation8 [shape = 'u8[8192]{0}', space=vmem, size = 0x2000, scoped, tag = 'input window, operand 2, single buffered']
    #allocation9 [shape = 'u8[512]{0}', space=vmem, size = 0x400, scoped, tag = 'output window, operand 1, single buffered']
    %11 = vsyncpa [#allocation4], 0
    %12 = vsyncpa [#allocation7], 0
    %13 = vsyncpa [#allocation5], 0
    // Predicated region
    $region2: #{tpu_custom_call.1} parent=1 // pred_check
      _
    $region3: #{tpu_custom_call.1} parent=1 // pred_check_branch
      %15 = sbr.rel (0) target = $region5
    $region4: #{tpu_custom_call.1} parent=1 // pred_region
      %s17 = ssub.s32 32, 32
      %18 = vsyncadd [#allocation4], %s17
      %s20 = sshll.u32 [#allocation3], 4
      %s21 = int_to_ptr.vmem [resolvable:$true] %s20
      %23 = dma.hbm_to_vmem [thread:$0]  %s0, 32, %s21, [#allocation4]
    $region5: #{tpu_custom_call.1} parent=1 // pred_fallthru
      _
    // Predicated region
    $region6: #{tpu_custom_call.1} parent=1 // pred_check
      _
    $region7: #{tpu_custom_call.1} parent=1 // pred_check_branch
      %25 = sbr.rel (0) target = $region9
    $region8: #{tpu_custom_call.1} parent=1 // pred_region
      %s27 = ssub.s32 256, 256
      %28 = vsyncadd [#allocation7], %s27
      %s29 = sshll.u32 [#allocation6], 4
      %s30 = int_to_ptr.vmem [resolvable:$true] %s29
      %35 = dma.hbm_to_vmem [thread:$0]  %s1, 256, %s30, [#allocation7], 128, 128, 8
    $region9: #{tpu_custom_call.1} parent=1 // pred_fallthru
      _
    // Predicated region
    $region10: #{tpu_custom_call.1} parent=1 // pred_check
      _
    $region11: #{tpu_custom_call.1} parent=1 // pred_check_branch
      %37 = sbr.rel (0) target = $region13
    $region12: #{tpu_custom_call.1} parent=1 // pred_region
      %s39 = ssub.s32 256, 256
      %40 = vsyncadd [#allocation7], %s39
      %s41 = sshll.u32 [#allocation8], 4
      %s42 = int_to_ptr.vmem [resolvable:$true] %s41
      %47 = dma.hbm_to_vmem [thread:$0]  %s2, 256, %s42, [#allocation7], 128, 128, 8
    $region13: #{tpu_custom_call.1} parent=1 // pred_fallthru
      _
    // Predicated region
    $region14: #{tpu_custom_call.1} parent=1 // pred_check
      _
    $region15: #{tpu_custom_call.1} parent=1 // pred_check_branch
      %49 = sbr.rel (0) target = $region17
    $region16: #{tpu_custom_call.1} parent=1 // pred_region
      %50 = dma.done [#allocation4], 32
    $region17: #{tpu_custom_call.1} parent=1 // pred_fallthru
      _
    // Predicated region
    $region18: #{tpu_custom_call.1} parent=1 // pred_check
      _
    $region19: #{tpu_custom_call.1} parent=1 // pred_check_branch
      %52 = sbr.rel (0) target = $region21
    $region20: #{tpu_custom_call.1} parent=1 // pred_region
      %53 = dma.done [#allocation7], 256
    $region21: #{tpu_custom_call.1} parent=1 // pred_fallthru
      _
    // Predicated region
    $region22: #{tpu_custom_call.1} parent=1 // pred_check
      _
    $region23: #{tpu_custom_call.1} parent=1 // pred_check_branch
      %55 = sbr.rel (0) target = $region25
    $region24: #{tpu_custom_call.1} parent=1 // pred_region
      %56 = dma.done [#allocation7], 256
    $region25: #{tpu_custom_call.1} parent=1 // pred_fallthru
      _
    %p57 = scmp.eq.s32.totalorder 0, 0
    // Predicated region
    $region26: #{tpu_custom_call.1} parent=1 // pred_check
      %p58 = pneg %p57
    $region27: #{tpu_custom_call.1} parent=1 // pred_check_branch
      %60 = sbr.rel (%p58) target = $region29
    $region28: #{tpu_custom_call.1} parent=1 // pred_region
      %vm61 = vcmask 0
      %62 = vst.msk [vmem:[#allocation2] sm:$0x1] %vm61, 0.0
    $region29: #{tpu_custom_call.1} parent=1 // pred_fallthru
      _
    %v63 = vld [vmem:[#allocation6] sm:$0xff]
    %v64 = vld [vmem:[#allocation6 + $0x8] sm:$0xff]
    %v65 = vld [vmem:[#allocation8] sm:$0xff]
    %v66 = vld [vmem:[#allocation8 + $0x8] sm:$0xff]
    %v67 = vsub.f32 %v63, %v65
    %v68 = vsub.f32 %v64, %v66
    %v69 = vld [vmem:[#allocation2] sm:$0x1]
    %v70 = vmul.f32 %v67, %v67
    %v71 = vmul.f32 %v68, %v68
    %v72 = vadd.f32 %v70, %v71
    %73 = vadd.xlane.f32.xlu0 %v72
    %v74 = vpop.xlane.xlu0 %73
    %v75 = vrot.slane %v74, 4
    %v76 = vadd.f32 %v74, %v75
    %v77 = vrot.slane %v76, 2
    %v78 = vadd.f32 %v76, %v77
    %v79 = vrot.slane %v78, 1
    %v80 = vadd.f32 %v78, %v79
    %s81 = vtos %v80
    %v82 = vstv %s81
    %v83 = vadd.f32 %v69, %v82
    %vm84 = vcmask 0
    %85 = vst.msk [vmem:[#allocation2] sm:$0x1] %vm84, %v83
    // Predicated region
    $region30: #{tpu_custom_call.1} parent=1 // pred_check
      %p86 = pneg %p57
    $region31: #{tpu_custom_call.1} parent=1 // pred_check_branch
      %88 = sbr.rel (%p86) target = $region33
    $region32: #{tpu_custom_call.1} parent=1 // pred_region
      %v89 = vld [vmem:[#allocation2] sm:$0x1]
      %v90 = vmul.f32 %v89, 0.00048828125
      %91 = vst.msk [vmem:[#allocation9] sm:$0x1] %vm84, %v90
      %v92 = vld [vmem:[#allocation3] sm:$0x3]
      %v93 = vadd.f32 %v92, 1e-07
      %v94 = vsub.f32 0.0, %v93
      %v95 = vlog2.pop %v93
      %v96 = vmul.f32 %v95, 0.6931472
      %v97 = vmul.f32 %v94, %v96
      %vm98 = vcmask 1041408
      %v99 = vsel %vm98, %v97, 0.0
      %100 = vadd.xlane.f32.xlu0 %v99
      %v101 = vpop.xlane.xlu0 %100
      %v102 = vmul.f32 %v101, 0.125
      %vm103 = vcmask 1024
      %104 = vst.msk [vmem:[%s5] sm:$0x3] %vm103, %v102
      %v105 = vmul.f32 %v102, 0.5
      %v107 = vlaneseq
      %v108 = vshrl.u32 %v107, 7
      %v109 = vsub.s32 0, %v108
      %v110 = vrot.slane %v90, %v109
      %v112 = vsub.f32 %v110, %v105
      %113 = vst.msk [vmem:[%s3] sm:$0x3] %vm103, %v112
    $region33: #{tpu_custom_call.1} parent=1 // pred_fallthru
      _
    // Predicated region
    $region34: #{tpu_custom_call.1} parent=1 // pred_check
      _
    $region35: #{tpu_custom_call.1} parent=1 // pred_check_branch
      %115 = sbr.rel (0) target = $region37
    $region36: #{tpu_custom_call.1} parent=1 // pred_region
      _
    $region37: #{tpu_custom_call.1} parent=1 // pred_fallthru
      _
    // Predicated region
    $region38: #{tpu_custom_call.1} parent=1 // pred_check
      _
    $region39: #{tpu_custom_call.1} parent=1 // pred_check_branch
      %117 = sbr.rel (0) target = $region41
    $region40: #{tpu_custom_call.1} parent=1 // pred_region
      %s119 = ssub.s32 16, 16
      %120 = vsyncadd [#allocation5], %s119
      %s122 = sshll.u32 [#allocation9], 4
      %s123 = int_to_ptr.vmem [resolvable:$true] %s122
      %125 = dma.vmem_to_hbm [thread:$0]  %s123, 16, %s4, [#allocation5]
    $region41: #{tpu_custom_call.1} parent=1 // pred_fallthru
      _
    // Predicated region
    $region42: #{tpu_custom_call.1} parent=1 // pred_check
      _
    $region43: #{tpu_custom_call.1} parent=1 // pred_check_branch
      %127 = sbr.rel (0) target = $region45
    $region44: #{tpu_custom_call.1} parent=1 // pred_region
      _
    $region45: #{tpu_custom_call.1} parent=1 // pred_fallthru
      _
    // Predicated region
    $region46: #{tpu_custom_call.1} parent=1 // pred_check
      _
    $region47: #{tpu_custom_call.1} parent=1 // pred_check_branch
      %129 = sbr.rel (0) target = $region49
    $region48: #{tpu_custom_call.1} parent=1 // pred_region
      _
    $region49: #{tpu_custom_call.1} parent=1 // pred_fallthru
      _
    // Predicated region
    $region50: #{tpu_custom_call.1} parent=1 // pred_check
      _
    $region51: #{tpu_custom_call.1} parent=1 // pred_check_branch
      %131 = sbr.rel (0) target = $region53
    $region52: #{tpu_custom_call.1} parent=1 // pred_region
      %132 = dma.done [#allocation5], 16
    $region53: #{tpu_custom_call.1} parent=1 // pred_fallthru
      _
    // Predicated region
    $region54: #{tpu_custom_call.1} parent=1 // pred_check
      _
    $region55: #{tpu_custom_call.1} parent=1 // pred_check_branch
      %134 = sbr.rel (0) target = $region57
    $region56: #{tpu_custom_call.1} parent=1 // pred_region
      _
    $region57: #{tpu_custom_call.1} parent=1 // pred_fallthru
      _
    %135 = vsyncpa [#allocation4], 1
    %136 = vsyncpa [#allocation7], 1
    %137 = vsyncpa [#allocation5], 1

</llo_original>
